<compile_context>
chip_gen: v6e
topology: v6e:2x2x1
jax: 0.10.0
libtpu: 0.0.40
codegen_flags: <defaults>
</compile_context>

<pallas_src>
import functools
import math

import jax
import jax.numpy as jnp
from jax.experimental import pallas as pl
from jax.experimental.pallas import tpu as pltpu

LANE = 128


def _round_up(x, m):
    return (x + m - 1) // m * m


def _vmem_limit_bytes():
    """Generation-aware VMEM allowance (v5e/v6e: 128 MiB physical, v7x: 64 MiB per core)."""
    try:
        cap = int(pltpu.get_tpu_info().vmem_capacity_bytes)
    except Exception:
        cap = 64 << 20  # conservative fallback (v7x per-core VMEM)
    return int(min(100 << 20, cap * 3 // 4))


def pack_qkv_params(wq, bq, wk, bk, wv, bv, *, mm_dtype=jnp.float32):
    """Pad head dims to multiples of 128 lanes, fold 1/sqrt(dim_k) into Q, concatenate.

    Call this ONCE outside the hot path; the packed arrays are reused verbatim by every
    self_attention() call (no per-call pad/concat XLA ops, no extra HBM traffic).
    """
    D, dq = wq.shape
    dv = wv.shape[1]
    dqp = _round_up(dq, LANE)
    dvp = _round_up(dv, LANE)
    scale = 1.0 / math.sqrt(dq)  # dim_k == dim_q in the module

    def pad_w(w, dp):
        return jnp.pad(w, ((0, 0), (0, dp - w.shape[1])))

    def pad_b(b, dp):
        return jnp.pad(b.reshape(1, -1), ((0, 0), (0, dp - b.shape[0])))

    # Fold the softmax scale into the Q projection (weights AND bias): the kernel then never
    # touches the (N, N) score matrix with a VPU scale multiply.
    w_qkv = jnp.concatenate(
        [pad_w(wq * scale, dqp), pad_w(wk, dqp), pad_w(wv, dvp)], axis=1)
    b_qkv = jnp.concatenate(
        [pad_b(bq * scale, dqp), pad_b(bk, dqp), pad_b(bv, dvp)], axis=1)

    # MXU operand dtype (bf16 is the fast path on v5e/v6e/v7x). Bias stays f32 — it is added
    # to the f32 accumulator, so keeping it full precision costs nothing.
    w_qkv = w_qkv.astype(mm_dtype)
    b_qkv = b_qkv.astype(jnp.float32)
    return {"w_qkv": w_qkv, "b_qkv": b_qkv, "dq": dq, "dv": dv, "dqp": dqp, "dvp": dvp}


def _self_attention_kernel(x_ref, w_ref, b_ref, o_ref, *, dqp, dvp):
    # x_ref: (Bt, N, D); w_ref: (D, 2*dqp + dvp); b_ref: (1, 2*dqp + dvp); o_ref: (Bt, N, dvp)
    bt, n, d = x_ref.shape
    mm_dtype = w_ref.dtype  # MXU operand dtype chosen at pack time (bf16 for bf16 inputs)

    # Fused QKV projection: one wide lane-dense matmul, f32 accumulation, f32 bias add.
    x = x_ref[...].reshape(bt * n, d).astype(mm_dtype)
    qkv = jnp.dot(x, w_ref[...], preferred_element_type=jnp.float32) + b_ref[...]

    # 128-aligned lane slices (padding columns are zero -> results unaffected).
    q = qkv[:, :dqp].reshape(bt, n, dqp)
    k = qkv[:, dqp:2 * dqp].reshape(bt, n, dqp)
    v = qkv[:, 2 * dqp:].reshape(bt, n, dvp)

    # Scores: contract the last dims of q and k directly — no materialized k.T.
    # 1/sqrt(dim_k) was folded into the Q weights/bias at pack time.
    s = jnp.einsum("bqd,bkd->bqk", q.astype(mm_dtype), k.astype(mm_dtype),
                   preferred_element_type=jnp.float32)

    # Numerically-stable softmax along the last axis (== torch.nn.Softmax(dim=-1)).
    s = s - jnp.max(s, axis=-1, keepdims=True)
    p = jnp.exp(s)
    p = p * pl.reciprocal(jnp.sum(p, axis=-1, keepdims=True), approx=True)  # EUP vrcp

    out = jnp.einsum("bqk,bkv->bqv", p.astype(mm_dtype), v.astype(mm_dtype),
                     preferred_element_type=jnp.float32)
    o_ref[...] = out.astype(o_ref.dtype)


def _step_vmem_bytes(bt, n, d, f, dqp, dvp, x_itemsize, o_itemsize, mm_itemsize):
    rows = bt * n
    total = 2 * rows * d * x_itemsize            # double-buffered x tiles
    total += 2 * rows * dvp * o_itemsize         # double-buffered output tiles
    total += d * f * mm_itemsize + f * 4         # single-buffered fused W / f32 bias
    total += rows * f * 4                        # f32 qkv projection
    total += 2 * bt * n * n * 4                  # f32 scores + softmax probabilities
    total += rows * dvp * 4                      # f32 PV result
    if mm_itemsize != 4:                         # bf16 operand copies for the einsums
        total += rows * (2 * dqp + dvp) * mm_itemsize + bt * n * n * mm_itemsize
    return total


def _choose_block_b(B, n, d, f, dqp, dvp, x_itemsize, o_itemsize, mm_itemsize, budget):
    # block_b only widens the projection's M dim. For n >= 128 the per-batch attention matmuls
    # already fill the MXU at block_b=1 and larger blocks just multiply the f32 (n, n) score
    # buffer in VMEM (hurts most on v7x), so pin it to 1.
    if n >= 128:
        return 1
    best = 1
    for bt in range(1, B + 1):
        if B % bt:
            continue
        if B >= 2 and B // bt < 2:
            # Keep >= 2 grid steps so the "parallel" axis can be split across v7x's two
            # TensorCores (and the input/output pipeline stays non-degenerate).
            continue
        if _step_vmem_bytes(bt, n, d, f, dqp, dvp, x_itemsize, o_itemsize, mm_itemsize) <= budget:
            best = bt
    return best


def self_attention(x, packed, *, block_b=None, return_padded=False):
    """x: (B, N, D); packed: output of pack_qkv_params()."""
    B, N, D = x.shape
    w_qkv, b_qkv = packed["w_qkv"], packed["b_qkv"]
    dv, dqp, dvp = packed["dv"], packed["dqp"], packed["dvp"]
    f = w_qkv.shape[1]
    assert w_qkv.shape[0] == D, (w_qkv.shape, D)

    vmem_limit = _vmem_limit_bytes()
    if block_b is None:
        block_b = _choose_block_b(
            B, N, D, f, dqp, dvp,
            x.dtype.itemsize, x.dtype.itemsize, w_qkv.dtype.itemsize,
            budget=int(vmem_limit * 0.6))
    assert B % block_b == 0, (B, block_b)

    kernel = functools.partial(_self_attention_kernel, dqp=dqp, dvp=dvp)

    def call(single_buffer_weights):
        # Grid-invariant weight/bias: the second pipeline buffer is dead weight -> Buffered(1).
        w_mode = pl.Buffered(1) if single_buffer_weights else None
        return pl.pallas_call(
            kernel,
            out_shape=jax.ShapeDtypeStruct((B, N, dvp), x.dtype),
            grid_spec=pltpu.PrefetchScalarGridSpec(
                num_scalar_prefetch=0,
                grid=(B // block_b,),
                in_specs=[
                    pl.BlockSpec((block_b, N, D), lambda i: (i, 0, 0)),   # x tile
                    pl.BlockSpec((D, f), lambda i: (0, 0), pipeline_mode=w_mode),  # fused W
                    pl.BlockSpec((1, f), lambda i: (0, 0), pipeline_mode=w_mode),  # fused b
                ],
                out_specs=pl.BlockSpec((block_b, N, dvp), lambda i: (i, 0, 0)),
            ),
            compiler_params=pltpu.CompilerParams(
                dimension_semantics=("parallel",),
                vmem_limit_bytes=vmem_limit),
        )(x, w_qkv, b_qkv)

    try:
        out_padded = call(single_buffer_weights=True)
    except Exception:
        # Fallback if single-buffering of grid-invariant operands is rejected by this jax build.
        out_padded = call(single_buffer_weights=False)

    if return_padded:
        return out_padded  # lane-dense slab; consumer slices [..., :dv] once at the very end
    return out_padded[:, :, :dv] if dvp != dv else out_padded


def reference_self_attention(x, wq, bq, wk, bk, wv, bv):
    q = jnp.einsum("bnd,de->bne", x, wq) + bq
    k = jnp.einsum("bnd,de->bne", x, wk) + bk
    v = jnp.einsum("bnd,de->bne", x, wv) + bv
    s = jnp.einsum("bqe,bke->bqk", q, k) / math.sqrt(wq.shape[1])
    p = jax.nn.softmax(s, axis=-1)
    return jnp.einsum("bqk,bkv->bqv", p, v)


if __name__ == "__main__":
    # Small shapes consistent with the module: batch=2, seq=8, input_dim=32, dim_q=16, dim_v=16
    B, N, D, DQ, DV = 2, 8, 32, 16, 16

    key = jax.random.PRNGKey(0)
    kx, kwq, kbq, kwk, kbk, kwv, kbv = jax.random.split(key, 7)

    x = jax.random.normal(kx, (B, N, D), dtype=jnp.float32)

    # Deterministic parameter init (mimics nn.Linear uniform(-1/sqrt(fan_in), 1/sqrt(fan_in)))
    bound = 1.0 / math.sqrt(D)
    wq = jax.random.uniform(kwq, (D, DQ), jnp.float32, -bound, bound)
    bq = jax.random.uniform(kbq, (DQ,), jnp.float32, -bound, bound)
    wk = jax.random.uniform(kwk, (D, DQ), jnp.float32, -bound, bound)
    bk = jax.random.uniform(kbk, (DQ,), jnp.float32, -bound, bound)
    wv = jax.random.uniform(kwv, (D, DV), jnp.float32, -bound, bound)
    bv = jax.random.uniform(kbv, (DV,), jnp.float32, -bound, bound)

    # Pack once (pads, folds the softmax scale, concatenates, sets the MXU operand dtype).
    mm_dtype = jnp.bfloat16 if x.dtype == jnp.bfloat16 else jnp.float32
    packed = pack_qkv_params(wq, bq, wk, bk, wv, bv, mm_dtype=mm_dtype)

    out = self_attention(x, packed)
    out = jax.block_until_ready(out)

    ref = reference_self_attention(x, wq, bq, wk, bk, wv, bv)
    assert out.shape == (B, N, DV), out.shape
    # Tolerance budget covers the approx (EUP vrcp) reciprocal in the softmax denominator.
    assert jnp.allclose(out, ref, atol=2e-3, rtol=2e-3), "mismatch vs reference"

    print("KERNEL_OK")
</pallas_src>

<mosaic_0001>
module attributes {stable_mosaic.version = 11 : i64} {
  func.func @_self_attention_kernel(%arg0: i32, %arg1: memref<1x8x32xf32, #tpu.memory_space<vmem>>, %arg2: memref<32x384xf32, #tpu.memory_space<vmem>>, %arg3: memref<1x384xf32, #tpu.memory_space<vmem>>, %arg4: memref<1x8x128xf32, #tpu.memory_space<vmem>>) attributes {dimension_semantics = [#tpu.dimension_semantics<parallel>], iteration_bounds = array<i64: 2>, scalar_prefetch = 0 : i64, scratch_operands = 0 : i64, tpu.core_type = #tpu.core_type<tc>, window_params = [{transform_indices = @transform_0, window_bounds = array<i64: 1, 8, 32>}, {pipeline_mode = #tpu.pipeline_mode<synchronous>, transform_indices = @transform_1, window_bounds = array<i64: 32, 384>}, {pipeline_mode = #tpu.pipeline_mode<synchronous>, transform_indices = @transform_2, window_bounds = array<i64: 1, 384>}, {transform_indices = @transform_3, window_bounds = array<i64: 1, 8, 128>}]} {
    %c0 = arith.constant 0 : index
    %c0_0 = arith.constant 0 : index
    %c0_1 = arith.constant 0 : index
    %0 = vector.load %arg1[%c0, %c0_0, %c0_1] : memref<1x8x32xf32, #tpu.memory_space<vmem>>, vector<1x8x32xf32>
    %1 = vector.shape_cast %0 : vector<1x8x32xf32> to vector<8x32xf32>
    %c0_2 = arith.constant 0 : index
    %c0_3 = arith.constant 0 : index
    %2 = vector.load %arg2[%c0_2, %c0_3] : memref<32x384xf32, #tpu.memory_space<vmem>>, vector<32x384xf32>
    %cst = arith.constant dense<0.000000e+00> : vector<8x384xf32>
    %3 = tpu.matmul %1, %2, %cst {dimension_numbers = #tpu.dot_dimension_numbers<[1], [0], [0], [1], [0, 0, 1, 1], [], []>} : vector<8x32xf32>, vector<32x384xf32>, vector<8x384xf32> -> vector<8x384xf32>
    %c0_4 = arith.constant 0 : index
    %c0_5 = arith.constant 0 : index
    %4 = vector.load %arg3[%c0_4, %c0_5] : memref<1x384xf32, #tpu.memory_space<vmem>>, vector<1x384xf32>
    %5 = vector.broadcast %4 : vector<1x384xf32> to vector<8x384xf32>
    %6 = arith.addf %3, %5 : vector<8x384xf32>
    %7 = vector.extract_strided_slice %6 {offsets = [0, 0], sizes = [8, 128], strides = [1, 1]} : vector<8x384xf32> to vector<8x128xf32>
    %8 = vector.shape_cast %7 : vector<8x128xf32> to vector<1x8x128xf32>
    %9 = vector.extract_strided_slice %6 {offsets = [0, 128], sizes = [8, 128], strides = [1, 1]} : vector<8x384xf32> to vector<8x128xf32>
    %10 = vector.shape_cast %9 : vector<8x128xf32> to vector<1x8x128xf32>
    %11 = vector.extract_strided_slice %6 {offsets = [0, 256], sizes = [8, 128], strides = [1, 1]} : vector<8x384xf32> to vector<8x128xf32>
    %12 = vector.shape_cast %11 : vector<8x128xf32> to vector<1x8x128xf32>
    "tpu.trace_start"() <{level = 10 : i32, message = "bqd,bkd->bqk"}> : () -> ()
    %cst_6 = arith.constant dense<0.000000e+00> : vector<1x8x8xf32>
    %13 = tpu.matmul %8, %10, %cst_6 {dimension_numbers = #tpu.dot_dimension_numbers<[2], [2], [1], [1], [0, 0, 0, 1, 1, 1], [0], [0]>} : vector<1x8x128xf32>, vector<1x8x128xf32>, vector<1x8x8xf32> -> vector<1x8x8xf32>
    "tpu.trace_stop"() : () -> ()
    %cst_7 = arith.constant dense<0xFF800000> : vector<1x8xf32>
    %14 = vector.multi_reduction <maximumf>, %13, %cst_7 [2] : vector<1x8x8xf32> to vector<1x8xf32>
    %15 = vector.shape_cast %14 : vector<1x8xf32> to vector<1x8x1xf32>
    %16 = vector.broadcast %15 : vector<1x8x1xf32> to vector<1x8x8xf32>
    %17 = arith.subf %13, %16 : vector<1x8x8xf32>
    %18 = math.exp %17 : vector<1x8x8xf32>
    %cst_8 = arith.constant dense<0.000000e+00> : vector<1x8xf32>
    %19 = vector.multi_reduction <add>, %18, %cst_8 [2] : vector<1x8x8xf32> to vector<1x8xf32>
    %20 = vector.shape_cast %19 : vector<1x8xf32> to vector<1x8x1xf32>
    %21 = tpu.reciprocal %20 {approx = true} : vector<1x8x1xf32> -> vector<1x8x1xf32>
    %22 = vector.broadcast %21 : vector<1x8x1xf32> to vector<1x8x8xf32>
    %23 = arith.mulf %18, %22 : vector<1x8x8xf32>
    "tpu.trace_start"() <{level = 10 : i32, message = "bqk,bkv->bqv"}> : () -> ()
    %cst_9 = arith.constant dense<0.000000e+00> : vector<1x8x128xf32>
    %24 = tpu.matmul %23, %12, %cst_9 {dimension_numbers = #tpu.dot_dimension_numbers<[2], [1], [1], [2], [0, 0, 0, 1, 1, 2], [0], [0]>} : vector<1x8x8xf32>, vector<1x8x128xf32>, vector<1x8x128xf32> -> vector<1x8x128xf32>
    "tpu.trace_stop"() : () -> ()
    %c0_10 = arith.constant 0 : index
    %c0_11 = arith.constant 0 : index
    %c0_12 = arith.constant 0 : index
    %25 = vector.load %arg4[%c0_10, %c0_11, %c0_12] : memref<1x8x128xf32, #tpu.memory_space<vmem>>, vector<1x8x128xf32>
    tpu.vector_store %arg4[%c0_10, %c0_11, %c0_12], %24 {strides = array<i32>} : memref<1x8x128xf32, #tpu.memory_space<vmem>>, vector<1x8x128xf32>,
    return
  }
  func.func @transform_0(%arg0: i32) -> (i32, i32, i32) {
    %c0_i32 = arith.constant 0 : i32
    %c0_i32_0 = arith.constant 0 : i32
    %c0_i32_1 = arith.constant 0 : i32
    return %arg0, %c0_i32, %c0_i32_0 : i32, i32, i32
  }
  func.func @transform_1(%arg0: i32) -> (i32, i32) {
    %c0_i32 = arith.constant 0 : i32
    %c0_i32_0 = arith.constant 0 : i32
    %c0_i32_1 = arith.constant 0 : i32
    return %c0_i32, %c0_i32_0 : i32, i32
  }
  func.func @transform_2(%arg0: i32) -> (i32, i32) {
    %c0_i32 = arith.constant 0 : i32
    %c0_i32_0 = arith.constant 0 : i32
    %c0_i32_1 = arith.constant 0 : i32
    return %c0_i32, %c0_i32_0 : i32, i32
  }
  func.func @transform_3(%arg0: i32) -> (i32, i32, i32) {
    %c0_i32 = arith.constant 0 : i32
    %c0_i32_0 = arith.constant 0 : i32
    %c0_i32_1 = arith.constant 0 : i32
    return %arg0, %c0_i32, %c0_i32_0 : i32, i32, i32
  }
}

module attributes {stable_mosaic.version = 11 : i64} {
  func.func @_self_attention_kernel(%arg0: i32, %arg1: memref<1x8x32xf32, #tpu.memory_space<vmem>>, %arg2: memref<32x384xf32, #tpu.memory_space<vmem>>, %arg3: memref<1x384xf32, #tpu.memory_space<vmem>>, %arg4: memref<1x8x128xf32, #tpu.memory_space<vmem>>) attributes {dimension_semantics = [#tpu.dimension_semantics<parallel>], iteration_bounds = array<i64: 2>, scalar_prefetch = 0 : i64, scratch_operands = 0 : i64, tpu.core_type = #tpu.core_type<tc>, window_params = [{transform_indices = @transform_0, window_bounds = array<i64: 1, 8, 32>}, {pipeline_mode = #tpu.pipeline_mode<synchronous>, transform_indices = @transform_1, window_bounds = array<i64: 32, 384>}, {pipeline_mode = #tpu.pipeline_mode<synchronous>, transform_indices = @transform_2, window_bounds = array<i64: 1, 384>}, {transform_indices = @transform_3, window_bounds = array<i64: 1, 8, 128>}]} {
    %c0 = arith.constant 0 : index
    %c0_0 = arith.constant 0 : index
    %c0_1 = arith.constant 0 : index
    %0 = vector.load %arg1[%c0, %c0_0, %c0_1] : memref<1x8x32xf32, #tpu.memory_space<vmem>>, vector<1x8x32xf32>
    %1 = vector.shape_cast %0 : vector<1x8x32xf32> to vector<8x32xf32>
    %c0_2 = arith.constant 0 : index
    %c0_3 = arith.constant 0 : index
    %2 = vector.load %arg2[%c0_2, %c0_3] : memref<32x384xf32, #tpu.memory_space<vmem>>, vector<32x384xf32>
    %cst = arith.constant dense<0.000000e+00> : vector<8x384xf32>
    %3 = tpu.matmul %1, %2, %cst {dimension_numbers = #tpu.dot_dimension_numbers<[1], [0], [0], [1], [0, 0, 1, 1], [], []>} : vector<8x32xf32>, vector<32x384xf32>, vector<8x384xf32> -> vector<8x384xf32>
    %c0_4 = arith.constant 0 : index
    %c0_5 = arith.constant 0 : index
    %4 = vector.load %arg3[%c0_4, %c0_5] : memref<1x384xf32, #tpu.memory_space<vmem>>, vector<1x384xf32>
    %5 = vector.broadcast %4 : vector<1x384xf32> to vector<8x384xf32>
    %6 = arith.addf %3, %5 : vector<8x384xf32>
    %7 = vector.extract_strided_slice %6 {offsets = [0, 0], sizes = [8, 128], strides = [1, 1]} : vector<8x384xf32> to vector<8x128xf32>
    %8 = vector.shape_cast %7 : vector<8x128xf32> to vector<1x8x128xf32>
    %9 = vector.extract_strided_slice %6 {offsets = [0, 128], sizes = [8, 128], strides = [1, 1]} : vector<8x384xf32> to vector<8x128xf32>
    %10 = vector.shape_cast %9 : vector<8x128xf32> to vector<1x8x128xf32>
    %11 = vector.extract_strided_slice %6 {offsets = [0, 256], sizes = [8, 128], strides = [1, 1]} : vector<8x384xf32> to vector<8x128xf32>
    %12 = vector.shape_cast %11 : vector<8x128xf32> to vector<1x8x128xf32>
    "tpu.trace_start"() <{level = 10 : i32, message = "bqd,bkd->bqk"}> : () -> ()
    %cst_6 = arith.constant dense<0.000000e+00> : vector<1x8x8xf32>
    %13 = tpu.matmul %8, %10, %cst_6 {dimension_numbers = #tpu.dot_dimension_numbers<[2], [2], [1], [1], [0, 0, 0, 1, 1, 1], [0], [0]>} : vector<1x8x128xf32>, vector<1x8x128xf32>, vector<1x8x8xf32> -> vector<1x8x8xf32>
    "tpu.trace_stop"() : () -> ()
    %cst_7 = arith.constant dense<0xFF800000> : vector<1x8xf32>
    %14 = vector.multi_reduction <maximumf>, %13, %cst_7 [2] : vector<1x8x8xf32> to vector<1x8xf32>
    %15 = vector.shape_cast %14 : vector<1x8xf32> to vector<1x8x1xf32>
    %16 = vector.broadcast %15 : vector<1x8x1xf32> to vector<1x8x8xf32>
    %17 = arith.subf %13, %16 : vector<1x8x8xf32>
    %18 = math.exp %17 : vector<1x8x8xf32>
    %cst_8 = arith.constant dense<0.000000e+00> : vector<1x8xf32>
    %19 = vector.multi_reduction <add>, %18, %cst_8 [2] : vector<1x8x8xf32> to vector<1x8xf32>
    %20 = vector.shape_cast %19 : vector<1x8xf32> to vector<1x8x1xf32>
    %21 = tpu.reciprocal %20 {approx = true} : vector<1x8x1xf32> -> vector<1x8x1xf32>
    %22 = vector.broadcast %21 : vector<1x8x1xf32> to vector<1x8x8xf32>
    %23 = arith.mulf %18, %22 : vector<1x8x8xf32>
    "tpu.trace_start"() <{level = 10 : i32, message = "bqk,bkv->bqv"}> : () -> ()
    %cst_9 = arith.constant dense<0.000000e+00> : vector<1x8x128xf32>
    %24 = tpu.matmul %23, %12, %cst_9 {dimension_numbers = #tpu.dot_dimension_numbers<[2], [1], [1], [2], [0, 0, 0, 1, 1, 2], [0], [0]>} : vector<1x8x8xf32>, vector<1x8x128xf32>, vector<1x8x128xf32> -> vector<1x8x128xf32>
    "tpu.trace_stop"() : () -> ()
    %c0_10 = arith.constant 0 : index
    %c0_11 = arith.constant 0 : index
    %c0_12 = arith.constant 0 : index
    %25 = vector.load %arg4[%c0_10, %c0_11, %c0_12] : memref<1x8x128xf32, #tpu.memory_space<vmem>>, vector<1x8x128xf32>
    tpu.vector_store %arg4[%c0_10, %c0_11, %c0_12], %24 {strides = array<i32>} : memref<1x8x128xf32, #tpu.memory_space<vmem>>, vector<1x8x128xf32>,
    return
  }
  func.func @transform_0(%arg0: i32) -> (i32, i32, i32) {
    %c0_i32 = arith.constant 0 : i32
    %c0_i32_0 = arith.constant 0 : i32
    %c0_i32_1 = arith.constant 0 : i32
    return %arg0, %c0_i32, %c0_i32_0 : i32, i32, i32
  }
  func.func @transform_1(%arg0: i32) -> (i32, i32) {
    %c0_i32 = arith.constant 0 : i32
    %c0_i32_0 = arith.constant 0 : i32
    %c0_i32_1 = arith.constant 0 : i32
    return %c0_i32, %c0_i32_0 : i32, i32
  }
  func.func @transform_2(%arg0: i32) -> (i32, i32) {
    %c0_i32 = arith.constant 0 : i32
    %c0_i32_0 = arith.constant 0 : i32
    %c0_i32_1 = arith.constant 0 : i32
    return %c0_i32, %c0_i32_0 : i32, i32
  }
  func.func @transform_3(%arg0: i32) -> (i32, i32, i32) {
    %c0_i32 = arith.constant 0 : i32
    %c0_i32_0 = arith.constant 0 : i32
    %c0_i32_1 = arith.constant 0 : i32
    return %arg0, %c0_i32, %c0_i32_0 : i32, i32, i32
  }
}

</mosaic_0001>

<llo_original>
// kernel: tpu_custom_call.1
$region0: #{tpu_custom_call.1}
  #allocation0 [shape = 'u32[]', space=smem, size = 0x4, offset = 0x4, fixed_abs, tag = 'smem constant byte address 0x4 - core index']
  #allocation1 [shape = 'u32[144,128]{1,0:T(1,128)}', space=vmem, size = 0x12000, scoped, tag = 'internal scratch']
  %s0 = inlined_call_operand.hbm [shape: f32[2,8,32], index: 0, kind: input, shape index: {}]
  %s1 = inlined_call_operand.hbm [shape: f32[32,384], index: 1, kind: input, shape index: {}]
  %s2 = inlined_call_operand.vmem [shape: f32[1,384], index: 2, kind: input, shape index: {}]
  %s3 = inlined_call_operand.hbm [shape: f32[2,8,128], index: 3, kind: output, shape index: {}]
  %s4 = sld [smem:[#allocation0]]
  $region53: #{tpu_custom_call.1} parent=0
    _
  %s6 = ssub.s32 1, %s4
  %s7 = scalar_select 0, %s6, %s4
  $region1: #{tpu_custom_call.1} parent=0
    #allocation2 [shape = 'u8[8192]{0}', space=vmem, size = 0x2000, scoped, tag = 'input window, operand 0']
    #allocation3 [shape = 's32[2]{0}', space=sflag, size = 0x8, scoped, tag = 'scoped memory for tpu_custom_call.1']
    #allocation4 [shape = 's32[2]{0}', space=sflag, size = 0x8, scoped, tag = 'scoped memory for tpu_custom_call.1']
    #allocation5 [shape = 'u8[49152]{0}', space=vmem, size = 0xc000, scoped, tag = 'input window, operand 1, single buffered']
    #allocation6 [shape = 's32[1]{0}', space=sflag, size = 0x4, scoped, tag = 'scoped memory for tpu_custom_call.1']
    #allocation7 [shape = 'u8[8192]{0}', space=vmem, size = 0x2000, scoped, tag = 'output window, operand 0']
    %8 = vsyncpa [#allocation3], 0
    %s9 = scalar_lea.sflag [#allocation3], 1
    %10 = vsyncpa %s9, 0
    %11 = vsyncpa [#allocation6], 0
    %12 = vsyncpa [#allocation4], 0
    %s13 = scalar_lea.sflag [#allocation4], 1
    %14 = vsyncpa %s13, 0
    loop: start=0, step=1, limit=4
    $region2: #{tpu_custom_call.1} parent=1 // loop_pre_header
      _
    $region3: #{tpu_custom_call.1} parent=1 // loop_header
      %s16 = sphi 0, %s20
      %p17 = scmp.ge.s32.totalorder %s16, 4
      %s26 = sphi 0, %s28
      %s29 = sphi 0, %s26
      %s30 = sphi 0, %s29
      %s46 = sphi 0, %s30
      %s50 = sphi 0, %s50
      %s52 = sphi 0, %s50
      %s53 = sphi 0, %s52
      %s67 = sphi 0, %s53
      %s71 = sphi 0, %s71
      %s73 = sphi 0, %s71
      %s74 = sphi 0, %s73
      %s88 = sphi 0, %s74
      %s94 = sphi 0, %s96
      %s97 = sphi 0, %s94
      %s98 = sphi 0, %s97
      %s114 = sphi 0, %s98
    $region4: #{tpu_custom_call.1} parent=1 // loop_header_branch
      %19 = sbr.rel (%p17) target = $region8
    $region5: #{tpu_custom_call.1} parent=1 // loop_body
      %s21 = ssub.s32 %s16, 1
      %s22 = ssub.s32 %s16, 2
      %s23 = sadd.s32 %s16, 1
      %s24 = ssub.s32 %s16, %s23
      %p25 = scmp.eq.s32.totalorder %s24, 0
      %s27 = sadd.s32 %s26, 1
      %s28 = scalar_select %p25, %s26, %s27
      %p31 = pneg %p25
      %p32 = scmp.eq.s32.totalorder %s16, 1
      %p33 = por %p31, %p32
      %p34 = scmp.ne.s32.totalorder %s26, %s29
      %p35 = scmp.eq.s32.totalorder %s16, 0
      %p36 = por %p34, %p35
      %p37 = scmp.ne.s32.totalorder %s26, %s29
      %p38 = scmp.eq.s32.totalorder %s21, 1
      %p39 = por %p37, %p38
      %p40 = scmp.ne.s32.totalorder %s29, %s30
      %p41 = scmp.eq.s32.totalorder %s21, 0
      %p42 = por %p40, %p41
      %p43 = scmp.ne.s32.totalorder %s29, %s30
      %p44 = scmp.eq.s32.totalorder %s22, 1
      %p45 = por %p43, %p44
      %p47 = scmp.ne.s32.totalorder %s30, %s46
      %p48 = scmp.eq.s32.totalorder %s22, 0
      %p49 = por %p47, %p48
      %s51 = sadd.s32 %s50, 1
      %p54 = scmp.eq.s32.totalorder %s16, 1
      %p55 = scmp.ne.s32.totalorder %s50, %s52
      %p56 = scmp.eq.s32.totalorder %s16, 0
      %p57 = por %p55, %p56
      %p58 = scmp.ne.s32.totalorder %s50, %s52
      %p59 = scmp.eq.s32.totalorder %s21, 1
      %p60 = por %p58, %p59
      %p61 = scmp.ne.s32.totalorder %s52, %s53
      %p62 = scmp.eq.s32.totalorder %s21, 0
      %p63 = por %p61, %p62
      %p64 = scmp.ne.s32.totalorder %s52, %s53
      %p65 = scmp.eq.s32.totalorder %s22, 1
      %p66 = por %p64, %p65
      %p68 = scmp.ne.s32.totalorder %s53, %s67
      %p69 = scmp.eq.s32.totalorder %s22, 0
      %p70 = por %p68, %p69
      %s72 = sadd.s32 %s71, 1
      %p75 = scmp.eq.s32.totalorder %s16, 1
      %p76 = scmp.ne.s32.totalorder %s71, %s73
      %p77 = scmp.eq.s32.totalorder %s16, 0
      %p78 = por %p76, %p77
      %p79 = scmp.ne.s32.totalorder %s71, %s73
      %p80 = scmp.eq.s32.totalorder %s21, 1
      %p81 = por %p79, %p80
      %p82 = scmp.ne.s32.totalorder %s73, %s74
      %p83 = scmp.eq.s32.totalorder %s21, 0
      %p84 = por %p82, %p83
      %p85 = scmp.ne.s32.totalorder %s73, %s74
      %p86 = scmp.eq.s32.totalorder %s22, 1
      %p87 = por %p85, %p86
      %p89 = scmp.ne.s32.totalorder %s74, %s88
      %p90 = scmp.eq.s32.totalorder %s22, 0
      %p91 = por %p89, %p90
      %s92 = ssub.s32 %s16, %s23
      %p93 = scmp.eq.s32.totalorder %s92, 0
      %s95 = sadd.s32 %s94, 1
      %s96 = scalar_select %p93, %s94, %s95
      %p99 = pneg %p93
      %p100 = scmp.eq.s32.totalorder %s16, 1
      %p101 = por %p99, %p100
      %p102 = scmp.ne.s32.totalorder %s94, %s97
      %p103 = scmp.eq.s32.totalorder %s16, 0
      %p104 = por %p102, %p103
      %p105 = scmp.ne.s32.totalorder %s94, %s97
      %p106 = scmp.eq.s32.totalorder %s21, 1
      %p107 = por %p105, %p106
      %p108 = scmp.ne.s32.totalorder %s97, %s98
      %p109 = scmp.eq.s32.totalorder %s21, 0
      %p110 = por %p108, %p109
      %p111 = scmp.ne.s32.totalorder %s97, %s98
      %p112 = scmp.eq.s32.totalorder %s22, 1
      %p113 = por %p111, %p112
      %p115 = scmp.ne.s32.totalorder %s98, %s114
      %p116 = scmp.eq.s32.totalorder %s22, 0
      %p117 = por %p115, %p116
      %p118 = scmp.le.s32.totalorder 1, %s16
      %p119 = scmp.lt.s32.totalorder %s16, 3
      %p120 = pnand %p118, %p119
      %p121 = pneg %p120
      // Predicated region
      $region9: #{tpu_custom_call.1} parent=5 // pred_check
        _
      $region10: #{tpu_custom_call.1} parent=5 // pred_check_branch
        %123 = sbr.rel (%p120) target = $region12
      $region11: #{tpu_custom_call.1} parent=5 // pred_region
        %s124 = ssub.s32 %s16, 1
        // Predicated region
        $region13: #{tpu_custom_call.1} parent=11 // pred_check
          %p125 = pneg %p63
        $region14: #{tpu_custom_call.1} parent=11 // pred_check_branch
          %127 = sbr.rel (%p125) target = $region16
        $region15: #{tpu_custom_call.1} parent=11 // pred_region
          %s129 = ssub.s32 1536, 1536
          %130 = vsyncadd [#allocation6], %s129
          %s131 = sshll.u32 [#allocation5], 4
          %s132 = int_to_ptr.vmem [resolvable:$true] %s131
          %137 = dma.hbm_to_vmem [thread:$0]  %s1, 1536, %s132, [#allocation6], 384, 384, 24
        $region16: #{tpu_custom_call.1} parent=11 // pred_fallthru
          _
        // Predicated region
        $region17: #{tpu_custom_call.1} parent=11 // pred_check
          %p138 = pneg %p84
        $region18: #{tpu_custom_call.1} parent=11 // pred_check_branch
          %140 = sbr.rel (%p138) target = $region20
        $region19: #{tpu_custom_call.1} parent=11 // pred_region
          _
        $region20: #{tpu_custom_call.1} parent=11 // pred_fallthru
          _
      $region12: #{tpu_custom_call.1} parent=5 // pred_fallthru
        _
      %p141 = scmp.lt.s32.totalorder %s16, 2
      // Predicated region
      $region21: #{tpu_custom_call.1} parent=5 // pred_check
        %p142 = pneg %p141
      $region22: #{tpu_custom_call.1} parent=5 // pred_check_branch
        %144 = sbr.rel (%p142) target = $region24
      $region23: #{tpu_custom_call.1} parent=5 // pred_region
        // Predicated region
        $region25: #{tpu_custom_call.1} parent=23 // pred_check
          %p145 = pneg %p36
        $region26: #{tpu_custom_call.1} parent=23 // pred_check_branch
          %147 = sbr.rel (%p145) target = $region28
        $region27: #{tpu_custom_call.1} parent=23 // pred_region
          %s148 = sand.u32 %s26, 1
          %s149 = scalar_lea.sflag [#allocation3], %s148
          %s150 = sand.u32 %s26, 1
          %s151 = smul.addr %s150, 8
          %s152 = scalar_lea.vmem [#allocation2], %s151
          %s154 = ssub.s32 128, 128
          %155 = vsyncadd %s149, %s154
          %s156 = smul.addr %s16, 128
          %s157 = scalar_lea.hbm %s0, %s156
          %s159 = sshll.u32 %s152, 4
          %s160 = int_to_ptr.vmem [resolvable:$true] %s159
          %162 = dma.hbm_to_vmem [thread:$0]  %s157, 128, %s160, %s149
        $region28: #{tpu_custom_call.1} parent=23 // pred_fallthru
          _
      $region24: #{tpu_custom_call.1} parent=5 // pred_fallthru
        _
      %p163 = scmp.le.s32.totalorder 1, %s16
      %p164 = scmp.lt.s32.totalorder %s16, 3
      %p165 = pnand %p163, %p164
      %p166 = pneg %p165
      // Predicated region
      $region29: #{tpu_custom_call.1} parent=5 // pred_check
        _
      $region30: #{tpu_custom_call.1} parent=5 // pred_check_branch
        %168 = sbr.rel (%p165) target = $region32
      $region31: #{tpu_custom_call.1} parent=5 // pred_region
        %s169 = ssub.s32 %s16, 1
        %s170 = sand.u32 %s29, 1
        %s171 = scalar_lea.sflag [#allocation3], %s170
        %s172 = sand.u32 %s29, 1
        %s173 = smul.addr %s172, 8
        %s174 = scalar_lea.vmem [#allocation2], %s173
        // Predicated region
        $region33: #{tpu_custom_call.1} parent=31 // pred_check
          %p175 = pneg %p42
        $region34: #{tpu_custom_call.1} parent=31 // pred_check_branch
          %177 = sbr.rel (%p175) target = $region36
        $region35: #{tpu_custom_call.1} parent=31 // pred_region
          %178 = dma.done %s171, 128
        $region36: #{tpu_custom_call.1} parent=31 // pred_fallthru
          _
        // Predicated region
        $region37: #{tpu_custom_call.1} parent=31 // pred_check
          %p179 = pneg %p63
        $region38: #{tpu_custom_call.1} parent=31 // pred_check_branch
          %181 = sbr.rel (%p179) target = $region40
        $region39: #{tpu_custom_call.1} parent=31 // pred_region
          %182 = dma.done [#allocation6], 1536
        $region40: #{tpu_custom_call.1} parent=31 // pred_fallthru
          _
        %s183 = sand.u32 %s29, 1
        %s184 = scalar_lea.sflag [#allocation3], %s183
        %s185 = sand.u32 %s29, 1
        %s186 = smul.addr %s185, 8
        %s187 = scalar_lea.vmem [#allocation2], %s186
        %p188 = pneg %p42
        %p189 = pneg %p39
        %p190 = pneg %p63
        %p191 = pneg %p60
        %p192 = pneg %p84
        %p193 = pneg %p81
        %p194 = pneg %p110
        %p195 = pneg %p107
        %s196 = sand.u32 %s97, 1
        %s197 = scalar_lea.sflag [#allocation4], %s196
        %s198 = sand.u32 %s97, 1
        %s199 = smul.addr %s198, 8
        %s200 = scalar_lea.vmem [#allocation7], %s199
        %v201 = vld [vmem:[%s174] sm:$0xff]
        %v202 = vld [vmem:[#allocation5] sm:$0xff]
        %v203 = vld [vmem:[#allocation5 + $0x8] sm:$0xff]
        %v204 = vld [vmem:[#allocation5 + $0x10] sm:$0xff]
        %v205 = vld [vmem:[#allocation5 + $0x18] sm:$0xff]
        %v206 = vld [vmem:[#allocation5 + $0x20] sm:$0xff]
        %v207 = vld [vmem:[#allocation5 + $0x28] sm:$0xff]
        %v208 = vld [vmem:[#allocation5 + $0x30] sm:$0xff]
        %v209 = vld [vmem:[#allocation5 + $0x38] sm:$0xff]
        %v210 = vld [vmem:[#allocation5 + $0x40] sm:$0xff]
        %v211 = vld [vmem:[#allocation5 + $0x48] sm:$0xff]
        %v212 = vld [vmem:[#allocation5 + $0x50] sm:$0xff]
        %v213 = vld [vmem:[#allocation5 + $0x58] sm:$0xff]
        %v214 = vld [vmem:[%s2] sm:$0x7]
        %v216 = vlaneseq
        %v217 = vshrl.u32 %v216, 7
        %v218 = vsub.s32 0, %v217
        %v219 = vrot.slane %v214, %v218
        %v220 = vlaneseq
        %v221 = vshrl.u32 %v220, 7
        %v222 = vsub.s32 1, %v221
        %v223 = vrot.slane %v214, %v222
        %v224 = vlaneseq
        %v225 = vshrl.u32 %v224, 7
        %v226 = vsub.s32 2, %v225
        %v227 = vrot.slane %v214, %v226
        %vm231 = vcmask 261120
        %v233 = vsel %vm231, %v201, 0
        %235 = vmatprep.subr.mxu0 0.0
        %236 = vmatpush1.msra.mxu0 0.0
        %237 = vmatprep.subr.mxu0 0.0
        %238 = vmatpush1.msra.mxu0 0.0
        %239 = vmatprep.subr.mxu0 0.0
        %240 = vmatpush1.msra.mxu0 0.0
        %241 = vmatprep.subr.mxu0 0.0
        %242 = vmatpush1.msra.mxu0 0.0
        %243 = vmatprep.subr.mxu0 0.0
        %244 = vmatpush1.msra.mxu0 0.0
        %245 = vmatprep.subr.mxu0 0.0
        %246 = vmatpush1.msra.mxu0 0.0
        %247 = vmatprep.subr.mxu0 0.0
        %248 = vmatpush1.msra.mxu0 0.0
        %249 = vmatprep.subr.mxu0 0.0
        %250 = vmatpush1.msra.mxu0 0.0
        %251 = vmatprep.subr.mxu0 0.0
        %252 = vmatpush1.msra.mxu0 0.0
        %253 = vmatprep.subr.mxu0 0.0
        %254 = vmatpush1.msra.mxu0 0.0
        %255 = vmatprep.subr.mxu0 0.0
        %256 = vmatpush1.msra.mxu0 0.0
        %257 = vmatprep.subr.mxu0 0.0
        %258 = vmatpush1.msra.mxu0 0.0
        %259 = vmatprep.subr.mxu0 %v212
        %260 = vmatpush1.msra.mxu0 %v211
        %261 = vmatprep.subr.mxu0 %v209
        %262 = vmatpush1.msra.mxu0 %v208
        %263 = vmatprep.subr.mxu0 %v206
        %264 = vmatpush1.msra.mxu0 %v205
        %265 = vmatprep.subr.mxu0 %v203
        %266 = vmatpush1.msra.mxu0 %v202
        %267 = vmatprep.subr.mxu0 0.0
        %268 = vmatpush2.msra.mxu0 0.0
        %269 = vmatprep.subr.mxu0 0.0
        %270 = vmatpush2.msra.mxu0 0.0
        %271 = vmatprep.subr.mxu0 0.0
        %272 = vmatpush2.msra.mxu0 0.0
        %273 = vmatprep.subr.mxu0 0.0
        %274 = vmatpush2.msra.mxu0 0.0
        %275 = vmatprep.subr.mxu0 0.0
        %276 = vmatpush2.msra.mxu0 0.0
        %277 = vmatprep.subr.mxu0 0.0
        %278 = vmatpush2.msra.mxu0 0.0
        %279 = vmatprep.subr.mxu0 0.0
        %280 = vmatpush2.msra.mxu0 0.0
        %281 = vmatprep.subr.mxu0 0.0
        %282 = vmatpush2.msra.mxu0 0.0
        %283 = vmatprep.subr.mxu0 0.0
        %284 = vmatpush2.msra.mxu0 0.0
        %285 = vmatprep.subr.mxu0 0.0
        %286 = vmatpush2.msra.mxu0 0.0
        %287 = vmatprep.subr.mxu0 0.0
        %288 = vmatpush2.msra.mxu0 0.0
        %289 = vmatprep.subr.mxu0 0.0
        %290 = vmatpush2.msra.mxu0 0.0
        %291 = vmatprep.subr.mxu0 0.0
        %292 = vmatpush2.msra.mxu0 0.0
        %293 = vmatprep.subr.mxu0 0.0
        %294 = vmatpush2.msra.mxu0 0.0
        %295 = vmatprep.subr.mxu0 0.0
        %296 = vmatpush2.msra.mxu0 0.0
        %297 = vmatprep.subr.mxu0 0.0
        %298 = vmatpush2.msra.mxu0 0.0
        %299 = vmatprep.mubr.f32.mxu0 0.0
        %300 = vmatmul.mubr.f32.gmra.mxu0 %v233
        %v301 = vpop.f32.mrf.mxu0
        %v302 = vadd.f32 %v219, %v301
        %v303 = vpop.f32.mrf.mxu0
        %v304 = vadd.f32 %v223, %v303
        %305 = vdwg.mxu0
        %306 = vmatprep.subr.mxu0 0.0
        %307 = vmatpush1.msra.mxu0 0.0
        %308 = vmatprep.subr.mxu0 0.0
        %309 = vmatpush1.msra.mxu0 0.0
        %310 = vmatprep.subr.mxu0 0.0
        %311 = vmatpush1.msra.mxu0 0.0
        %312 = vmatprep.subr.mxu0 0.0
        %313 = vmatpush1.msra.mxu0 0.0
        %314 = vmatprep.subr.mxu0 0.0
        %315 = vmatpush1.msra.mxu0 0.0
        %316 = vmatprep.subr.mxu0 0.0
        %317 = vmatpush1.msra.mxu0 0.0
        %318 = vmatprep.subr.mxu0 0.0
        %319 = vmatpush1.msra.mxu0 0.0
        %320 = vmatprep.subr.mxu0 0.0
        %321 = vmatpush1.msra.mxu0 0.0
        %322 = vmatprep.subr.mxu0 0.0
        %323 = vmatpush1.msra.mxu0 0.0
        %324 = vmatprep.subr.mxu0 0.0
        %325 = vmatpush1.msra.mxu0 0.0
        %326 = vmatprep.subr.mxu0 0.0
        %327 = vmatpush1.msra.mxu0 0.0
        %328 = vmatprep.subr.mxu0 0.0
        %329 = vmatpush1.msra.mxu0 0.0
        %330 = vmatprep.subr.mxu0 0.0
        %331 = vmatpush1.msra.mxu0 %v213
        %332 = vmatprep.subr.mxu0 0.0
        %333 = vmatpush1.msra.mxu0 %v210
        %334 = vmatprep.subr.mxu0 0.0
        %335 = vmatpush1.msra.mxu0 %v207
        %336 = vmatprep.subr.mxu0 0.0
        %337 = vmatpush1.msra.mxu0 %v204
        %338 = vmatprep.subr.mxu0 0.0
        %339 = vmatpush2.msra.mxu0 0.0
        %340 = vmatprep.subr.mxu0 0.0
        %341 = vmatpush2.msra.mxu0 0.0
        %342 = vmatprep.subr.mxu0 0.0
        %343 = vmatpush2.msra.mxu0 0.0
        %344 = vmatprep.subr.mxu0 0.0
        %345 = vmatpush2.msra.mxu0 0.0
        %346 = vmatprep.subr.mxu0 0.0
        %347 = vmatpush2.msra.mxu0 0.0
        %348 = vmatprep.subr.mxu0 0.0
        %349 = vmatpush2.msra.mxu0 0.0
        %350 = vmatprep.subr.mxu0 0.0
        %351 = vmatpush2.msra.mxu0 0.0
        %352 = vmatprep.subr.mxu0 0.0
        %353 = vmatpush2.msra.mxu0 0.0
        %354 = vmatprep.subr.mxu0 0.0
        %355 = vmatpush2.msra.mxu0 0.0
        %356 = vmatprep.subr.mxu0 0.0
        %357 = vmatpush2.msra.mxu0 0.0
        %358 = vmatprep.subr.mxu0 0.0
        %359 = vmatpush2.msra.mxu0 0.0
        %360 = vmatprep.subr.mxu0 0.0
        %361 = vmatpush2.msra.mxu0 0.0
        %362 = vmatprep.subr.mxu0 0.0
        %363 = vmatpush2.msra.mxu0 0.0
        %364 = vmatprep.subr.mxu0 0.0
        %365 = vmatpush2.msra.mxu0 0.0
        %366 = vmatprep.subr.mxu0 0.0
        %367 = vmatpush2.msra.mxu0 0.0
        %368 = vmatprep.subr.mxu0 0.0
        %369 = vmatpush2.msra.mxu0 0.0
        %370 = vmatprep.mubr.f32.mxu0 0.0
        %371 = vmatmul.mubr.f32.gmra.mxu0 %v233
        %v372 = vpop.f32.mrf.mxu0
        %v373 = vadd.f32 %v227, %v372
        %v374 = vpop.f32.mrf.mxu0
        %375 = vdwg.mxu0
        %376 = vmatprep.subr.mxu0 0.0
        %377 = vmatpush1.xpose.msra.mxu0 0.0
        %378 = vmatprep.subr.mxu0 0.0
        %379 = vmatpush1.xpose.msra.mxu0 0.0
        %380 = vmatprep.subr.mxu0 0.0
        %381 = vmatpush1.xpose.msra.mxu0 0.0
        %382 = vmatprep.subr.mxu0 0.0
        %383 = vmatpush1.xpose.msra.mxu0 0.0
        %384 = vmatprep.subr.mxu0 0.0
        %385 = vmatpush1.xpose.msra.mxu0 0.0
        %386 = vmatprep.subr.mxu0 0.0
        %387 = vmatpush1.xpose.msra.mxu0 0.0
        %388 = vmatprep.subr.mxu0 0.0
        %389 = vmatpush1.xpose.msra.mxu0 0.0
        %390 = vmatprep.subr.mxu0 0.0
        %391 = vmatpush1.xpose.msra.mxu0 0.0
        %392 = vmatprep.subr.mxu0 0.0
        %393 = vmatpush1.xpose.msra.mxu0 0.0
        %394 = vmatprep.subr.mxu0 0.0
        %395 = vmatpush1.xpose.msra.mxu0 0.0
        %396 = vmatprep.subr.mxu0 0.0
        %397 = vmatpush1.xpose.msra.mxu0 0.0
        %398 = vmatprep.subr.mxu0 0.0
        %399 = vmatpush1.xpose.msra.mxu0 0.0
        %400 = vmatprep.subr.mxu0 0.0
        %401 = vmatpush1.xpose.msra.mxu0 0.0
        %402 = vmatprep.subr.mxu0 0.0
        %403 = vmatpush1.xpose.msra.mxu0 0.0
        %404 = vmatprep.subr.mxu0 0.0
        %405 = vmatpush1.xpose.msra.mxu0 0.0
        %406 = vmatprep.subr.mxu0 0.0
        %407 = vmatpush1.xpose.msra.mxu0 %v304
        %408 = vmatprep.subr.mxu0 0.0
        %409 = vmatpush2.xpose.msra.mxu0 0.0
        %410 = vmatprep.subr.mxu0 0.0
        %411 = vmatpush2.xpose.msra.mxu0 0.0
        %412 = vmatprep.subr.mxu0 0.0
        %413 = vmatpush2.xpose.msra.mxu0 0.0
        %414 = vmatprep.subr.mxu0 0.0
        %415 = vmatpush2.xpose.msra.mxu0 0.0
        %416 = vmatprep.subr.mxu0 0.0
        %417 = vmatpush2.xpose.msra.mxu0 0.0
        %418 = vmatprep.subr.mxu0 0.0
        %419 = vmatpush2.xpose.msra.mxu0 0.0
        %420 = vmatprep.subr.mxu0 0.0
        %421 = vmatpush2.xpose.msra.mxu0 0.0
        %422 = vmatprep.subr.mxu0 0.0
        %423 = vmatpush2.xpose.msra.mxu0 0.0
        %424 = vmatprep.subr.mxu0 0.0
        %425 = vmatpush2.xpose.msra.mxu0 0.0
        %426 = vmatprep.subr.mxu0 0.0
        %427 = vmatpush2.xpose.msra.mxu0 0.0
        %428 = vmatprep.subr.mxu0 0.0
        %429 = vmatpush2.xpose.msra.mxu0 0.0
        %430 = vmatprep.subr.mxu0 0.0
        %431 = vmatpush2.xpose.msra.mxu0 0.0
        %432 = vmatprep.subr.mxu0 0.0
        %433 = vmatpush2.xpose.msra.mxu0 0.0
        %434 = vmatprep.subr.mxu0 0.0
        %435 = vmatpush2.xpose.msra.mxu0 0.0
        %436 = vmatprep.subr.mxu0 0.0
        %437 = vmatpush2.xpose.msra.mxu0 0.0
        %438 = vmatprep.subr.mxu0 0.0
        %439 = vmatpush2.xpose.msra.mxu0 0.0
        %440 = vmatprep.mubr.f32.mxu0 0.0
        %441 = vmatmul.mubr.f32.gmra.mxu0 %v302
        %v442 = vpop.f32.mrf.mxu0
        %v443 = vadd.f32 0.0, %v442
        %v444 = vpop.f32.mrf.mxu0
        %445 = vdwg.mxu0
        %vm446 = vcmask 64512
        %v447 = vsel %vm446, %v443, -inf
        %448 = vmax.xlane.f32.xlu0 %v447
        %v449 = vpop.xlane.xlu0 %448
        %v450 = vsub.f32 %v443, %v449
        %v451 = vmul.f32 %v450, 1.442695
        %v452 = vpow.pop %v451
        %v453 = vsel %vm446, %v452, 0.0
        %454 = vadd.xlane.f32.xlu0 %v453
        %v455 = vpop.xlane.xlu0 %454
        %v456 = vrcp.pop %v455
        %v457 = vmul.f32 %v452, %v456
        %v459 = vsel %vm446, %v457, 0
        %461 = vmatprep.subr.mxu0 0.0
        %462 = vmatpush1.msra.mxu0 0.0
        %463 = vmatprep.subr.mxu0 0.0
        %464 = vmatpush1.msra.mxu0 0.0
        %465 = vmatprep.subr.mxu0 0.0
        %466 = vmatpush1.msra.mxu0 0.0
        %467 = vmatprep.subr.mxu0 0.0
        %468 = vmatpush1.msra.mxu0 0.0
        %469 = vmatprep.subr.mxu0 0.0
        %470 = vmatpush1.msra.mxu0 0.0
        %471 = vmatprep.subr.mxu0 0.0
        %472 = vmatpush1.msra.mxu0 0.0
        %473 = vmatprep.subr.mxu0 0.0
        %474 = vmatpush1.msra.mxu0 0.0
        %475 = vmatprep.subr.mxu0 0.0
        %476 = vmatpush1.msra.mxu0 0.0
        %477 = vmatprep.subr.mxu0 0.0
        %478 = vmatpush1.msra.mxu0 0.0
        %479 = vmatprep.subr.mxu0 0.0
        %480 = vmatpush1.msra.mxu0 0.0
        %481 = vmatprep.subr.mxu0 0.0
        %482 = vmatpush1.msra.mxu0 0.0
        %483 = vmatprep.subr.mxu0 0.0
        %484 = vmatpush1.msra.mxu0 0.0
        %485 = vmatprep.subr.mxu0 0.0
        %486 = vmatpush1.msra.mxu0 0.0
        %487 = vmatprep.subr.mxu0 0.0
        %488 = vmatpush1.msra.mxu0 0.0
        %489 = vmatprep.subr.mxu0 0.0
        %490 = vmatpush1.msra.mxu0 0.0
        %491 = vmatprep.subr.mxu0 0.0
        %492 = vmatpush1.msra.mxu0 %v373
        %493 = vmatprep.subr.mxu0 0.0
        %494 = vmatpush2.msra.mxu0 0.0
        %495 = vmatprep.subr.mxu0 0.0
        %496 = vmatpush2.msra.mxu0 0.0
        %497 = vmatprep.subr.mxu0 0.0
        %498 = vmatpush2.msra.mxu0 0.0
        %499 = vmatprep.subr.mxu0 0.0
        %500 = vmatpush2.msra.mxu0 0.0
        %501 = vmatprep.subr.mxu0 0.0
        %502 = vmatpush2.msra.mxu0 0.0
        %503 = vmatprep.subr.mxu0 0.0
        %504 = vmatpush2.msra.mxu0 0.0
        %505 = vmatprep.subr.mxu0 0.0
        %506 = vmatpush2.msra.mxu0 0.0
        %507 = vmatprep.subr.mxu0 0.0
        %508 = vmatpush2.msra.mxu0 0.0
        %509 = vmatprep.subr.mxu0 0.0
        %510 = vmatpush2.msra.mxu0 0.0
        %511 = vmatprep.subr.mxu0 0.0
        %512 = vmatpush2.msra.mxu0 0.0
        %513 = vmatprep.subr.mxu0 0.0
        %514 = vmatpush2.msra.mxu0 0.0
        %515 = vmatprep.subr.mxu0 0.0
        %516 = vmatpush2.msra.mxu0 0.0
        %517 = vmatprep.subr.mxu0 0.0
        %518 = vmatpush2.msra.mxu0 0.0
        %519 = vmatprep.subr.mxu0 0.0
        %520 = vmatpush2.msra.mxu0 0.0
        %521 = vmatprep.subr.mxu0 0.0
        %522 = vmatpush2.msra.mxu0 0.0
        %523 = vmatprep.subr.mxu0 0.0
        %524 = vmatpush2.msra.mxu0 0.0
        %525 = vmatprep.mubr.f32.mxu0 0.0
        %526 = vmatmul.mubr.f32.gmra.mxu0 %v459
        %v527 = vpop.f32.mrf.mxu0
        %v528 = vadd.f32 0.0, %v527
        %v529 = vpop.f32.mrf.mxu0
        %530 = vdwg.mxu0
        %531 = vst [vmem:[%s200] sm:$0xff] %v528
        %s532 = sand.u32 %s97, 1
        %s533 = scalar_lea.sflag [#allocation4], %s532
        %s534 = sand.u32 %s97, 1
        %s535 = smul.addr %s534, 8
        %s536 = scalar_lea.vmem [#allocation7], %s535
        // Predicated region
        $region41: #{tpu_custom_call.1} parent=31 // pred_check
          %p537 = pneg %p107
        $region42: #{tpu_custom_call.1} parent=31 // pred_check_branch
          %539 = sbr.rel (%p537) target = $region44
        $region43: #{tpu_custom_call.1} parent=31 // pred_region
          %s541 = ssub.s32 128, 128
          %542 = vsyncadd %s533, %s541
          %s543 = smul.addr %s21, 128
          %s544 = scalar_lea.hbm %s3, %s543
          %s546 = sshll.u32 %s536, 4
          %s547 = int_to_ptr.vmem [resolvable:$true] %s546
          %549 = dma.vmem_to_hbm [thread:$0]  %s547, 128, %s544, %s533
        $region44: #{tpu_custom_call.1} parent=31 // pred_fallthru
          _
      $region32: #{tpu_custom_call.1} parent=5 // pred_fallthru
        _
      %p550 = scmp.le.s32.totalorder 2, %s16
      // Predicated region
      $region45: #{tpu_custom_call.1} parent=5 // pred_check
        %p551 = pneg %p550
      $region46: #{tpu_custom_call.1} parent=5 // pred_check_branch
        %553 = sbr.rel (%p551) target = $region48
      $region47: #{tpu_custom_call.1} parent=5 // pred_region
        %s554 = ssub.s32 %s16, 2
        // Predicated region
        $region49: #{tpu_custom_call.1} parent=47 // pred_check
          %p555 = pneg %p113
        $region50: #{tpu_custom_call.1} parent=47 // pred_check_branch
          %557 = sbr.rel (%p555) target = $region52
        $region51: #{tpu_custom_call.1} parent=47 // pred_region
          %s558 = sand.u32 %s98, 1
          %s559 = scalar_lea.sflag [#allocation4], %s558
          %s560 = sand.u32 %s98, 1
          %s561 = smul.addr %s560, 8
          %s562 = scalar_lea.vmem [#allocation7], %s561
          %563 = dma.done %s559, 128
        $region52: #{tpu_custom_call.1} parent=47 // pred_fallthru
          _
      $region48: #{tpu_custom_call.1} parent=5 // pred_fallthru
        _
    $region6: #{tpu_custom_call.1} parent=1 // loop_footer
      %s20 = sadd.s32 1, %s16
    $region7: #{tpu_custom_call.1} parent=1 // loop_footer_branch
      %15 = sbr.rel target = $region3
    $region8: #{tpu_custom_call.1} parent=1 // loop_exit
      _
    %564 = vsyncpa [#allocation3], 1
    %s565 = scalar_lea.sflag [#allocation3], 1
    %566 = vsyncpa %s565, 1
    %567 = vsyncpa [#allocation6], 1
    %568 = vsyncpa [#allocation4], 1
    %s569 = scalar_lea.sflag [#allocation4], 1
    %570 = vsyncpa %s569, 1

// kernel: tpu_custom_call.1
$region0: #{tpu_custom_call.1}
  #allocation0 [shape = 'u32[]', space=smem, size = 0x4, offset = 0x4, fixed_abs, tag = 'smem constant byte address 0x4 - core index']
  #allocation1 [shape = 'u32[144,128]{1,0:T(1,128)}', space=vmem, size = 0x12000, scoped, tag = 'internal scratch']
  %s0 = inlined_call_operand.hbm [shape: f32[2,8,32], index: 0, kind: input, shape index: {}]
  %s1 = inlined_call_operand.hbm [shape: f32[32,384], index: 1, kind: input, shape index: {}]
  %s2 = inlined_call_operand.vmem [shape: f32[1,384], index: 2, kind: input, shape index: {}]
  %s3 = inlined_call_operand.hbm [shape: f32[2,8,128], index: 3, kind: output, shape index: {}]
  %s4 = sld [smem:[#allocation0]]
  $region53: #{tpu_custom_call.1} parent=0
    _
  %s6 = ssub.s32 1, %s4
  %s7 = scalar_select 0, %s6, %s4
  $region1: #{tpu_custom_call.1} parent=0
    #allocation2 [shape = 'u8[8192]{0}', space=vmem, size = 0x2000, scoped, tag = 'input window, operand 0']
    #allocation3 [shape = 's32[2]{0}', space=sflag, size = 0x8, scoped, tag = 'scoped memory for tpu_custom_call.1']
    #allocation4 [shape = 's32[2]{0}', space=sflag, size = 0x8, scoped, tag = 'scoped memory for tpu_custom_call.1']
    #allocation5 [shape = 'u8[49152]{0}', space=vmem, size = 0xc000, scoped, tag = 'input window, operand 1, single buffered']
    #allocation6 [shape = 's32[1]{0}', space=sflag, size = 0x4, scoped, tag = 'scoped memory for tpu_custom_call.1']
    #allocation7 [shape = 'u8[8192]{0}', space=vmem, size = 0x2000, scoped, tag = 'output window, operand 0']
    %8 = vsyncpa [#allocation3], 0
    %s9 = scalar_lea.sflag [#allocation3], 1
    %10 = vsyncpa %s9, 0
    %11 = vsyncpa [#allocation6], 0
    %12 = vsyncpa [#allocation4], 0
    %s13 = scalar_lea.sflag [#allocation4], 1
    %14 = vsyncpa %s13, 0
    loop: start=0, step=1, limit=4
    $region2: #{tpu_custom_call.1} parent=1 // loop_pre_header
      _
    $region3: #{tpu_custom_call.1} parent=1 // loop_header
      %s16 = sphi 0, %s20
      %p17 = scmp.ge.s32.totalorder %s16, 4
      %s26 = sphi 0, %s28
      %s29 = sphi 0, %s26
      %s30 = sphi 0, %s29
      %s46 = sphi 0, %s30
      %s50 = sphi 0, %s50
      %s52 = sphi 0, %s50
      %s53 = sphi 0, %s52
      %s67 = sphi 0, %s53
      %s71 = sphi 0, %s71
      %s73 = sphi 0, %s71
      %s74 = sphi 0, %s73
      %s88 = sphi 0, %s74
      %s94 = sphi 0, %s96
      %s97 = sphi 0, %s94
      %s98 = sphi 0, %s97
      %s114 = sphi 0, %s98
    $region4: #{tpu_custom_call.1} parent=1 // loop_header_branch
      %19 = sbr.rel (%p17) target = $region8
    $region5: #{tpu_custom_call.1} parent=1 // loop_body
      %s21 = ssub.s32 %s16, 1
      %s22 = ssub.s32 %s16, 2
      %s23 = sadd.s32 %s16, 1
      %s24 = ssub.s32 %s16, %s23
      %p25 = scmp.eq.s32.totalorder %s24, 0
      %s27 = sadd.s32 %s26, 1
      %s28 = scalar_select %p25, %s26, %s27
      %p31 = pneg %p25
      %p32 = scmp.eq.s32.totalorder %s16, 1
      %p33 = por %p31, %p32
      %p34 = scmp.ne.s32.totalorder %s26, %s29
      %p35 = scmp.eq.s32.totalorder %s16, 0
      %p36 = por %p34, %p35
      %p37 = scmp.ne.s32.totalorder %s26, %s29
      %p38 = scmp.eq.s32.totalorder %s21, 1
      %p39 = por %p37, %p38
      %p40 = scmp.ne.s32.totalorder %s29, %s30
      %p41 = scmp.eq.s32.totalorder %s21, 0
      %p42 = por %p40, %p41
      %p43 = scmp.ne.s32.totalorder %s29, %s30
      %p44 = scmp.eq.s32.totalorder %s22, 1
      %p45 = por %p43, %p44
      %p47 = scmp.ne.s32.totalorder %s30, %s46
      %p48 = scmp.eq.s32.totalorder %s22, 0
      %p49 = por %p47, %p48
      %s51 = sadd.s32 %s50, 1
      %p54 = scmp.eq.s32.totalorder %s16, 1
      %p55 = scmp.ne.s32.totalorder %s50, %s52
      %p56 = scmp.eq.s32.totalorder %s16, 0
      %p57 = por %p55, %p56
      %p58 = scmp.ne.s32.totalorder %s50, %s52
      %p59 = scmp.eq.s32.totalorder %s21, 1
      %p60 = por %p58, %p59
      %p61 = scmp.ne.s32.totalorder %s52, %s53
      %p62 = scmp.eq.s32.totalorder %s21, 0
      %p63 = por %p61, %p62
      %p64 = scmp.ne.s32.totalorder %s52, %s53
      %p65 = scmp.eq.s32.totalorder %s22, 1
      %p66 = por %p64, %p65
      %p68 = scmp.ne.s32.totalorder %s53, %s67
      %p69 = scmp.eq.s32.totalorder %s22, 0
      %p70 = por %p68, %p69
      %s72 = sadd.s32 %s71, 1
      %p75 = scmp.eq.s32.totalorder %s16, 1
      %p76 = scmp.ne.s32.totalorder %s71, %s73
      %p77 = scmp.eq.s32.totalorder %s16, 0
      %p78 = por %p76, %p77
      %p79 = scmp.ne.s32.totalorder %s71, %s73
      %p80 = scmp.eq.s32.totalorder %s21, 1
      %p81 = por %p79, %p80
      %p82 = scmp.ne.s32.totalorder %s73, %s74
      %p83 = scmp.eq.s32.totalorder %s21, 0
      %p84 = por %p82, %p83
      %p85 = scmp.ne.s32.totalorder %s73, %s74
      %p86 = scmp.eq.s32.totalorder %s22, 1
      %p87 = por %p85, %p86
      %p89 = scmp.ne.s32.totalorder %s74, %s88
      %p90 = scmp.eq.s32.totalorder %s22, 0
      %p91 = por %p89, %p90
      %s92 = ssub.s32 %s16, %s23
      %p93 = scmp.eq.s32.totalorder %s92, 0
      %s95 = sadd.s32 %s94, 1
      %s96 = scalar_select %p93, %s94, %s95
      %p99 = pneg %p93
      %p100 = scmp.eq.s32.totalorder %s16, 1
      %p101 = por %p99, %p100
      %p102 = scmp.ne.s32.totalorder %s94, %s97
      %p103 = scmp.eq.s32.totalorder %s16, 0
      %p104 = por %p102, %p103
      %p105 = scmp.ne.s32.totalorder %s94, %s97
      %p106 = scmp.eq.s32.totalorder %s21, 1
      %p107 = por %p105, %p106
      %p108 = scmp.ne.s32.totalorder %s97, %s98
      %p109 = scmp.eq.s32.totalorder %s21, 0
      %p110 = por %p108, %p109
      %p111 = scmp.ne.s32.totalorder %s97, %s98
      %p112 = scmp.eq.s32.totalorder %s22, 1
      %p113 = por %p111, %p112
      %p115 = scmp.ne.s32.totalorder %s98, %s114
      %p116 = scmp.eq.s32.totalorder %s22, 0
      %p117 = por %p115, %p116
      %p118 = scmp.le.s32.totalorder 1, %s16
      %p119 = scmp.lt.s32.totalorder %s16, 3
      %p120 = pnand %p118, %p119
      %p121 = pneg %p120
      // Predicated region
      $region9: #{tpu_custom_call.1} parent=5 // pred_check
        _
      $region10: #{tpu_custom_call.1} parent=5 // pred_check_branch
        %123 = sbr.rel (%p120) target = $region12
      $region11: #{tpu_custom_call.1} parent=5 // pred_region
        %s124 = ssub.s32 %s16, 1
        // Predicated region
        $region13: #{tpu_custom_call.1} parent=11 // pred_check
          %p125 = pneg %p63
        $region14: #{tpu_custom_call.1} parent=11 // pred_check_branch
          %127 = sbr.rel (%p125) target = $region16
        $region15: #{tpu_custom_call.1} parent=11 // pred_region
          %s129 = ssub.s32 1536, 1536
          %130 = vsyncadd [#allocation6], %s129
          %s131 = sshll.u32 [#allocation5], 4
          %s132 = int_to_ptr.vmem [resolvable:$true] %s131
          %137 = dma.hbm_to_vmem [thread:$0]  %s1, 1536, %s132, [#allocation6], 384, 384, 24
        $region16: #{tpu_custom_call.1} parent=11 // pred_fallthru
          _
        // Predicated region
        $region17: #{tpu_custom_call.1} parent=11 // pred_check
          %p138 = pneg %p84
        $region18: #{tpu_custom_call.1} parent=11 // pred_check_branch
          %140 = sbr.rel (%p138) target = $region20
        $region19: #{tpu_custom_call.1} parent=11 // pred_region
          _
        $region20: #{tpu_custom_call.1} parent=11 // pred_fallthru
          _
      $region12: #{tpu_custom_call.1} parent=5 // pred_fallthru
        _
      %p141 = scmp.lt.s32.totalorder %s16, 2
      // Predicated region
      $region21: #{tpu_custom_call.1} parent=5 // pred_check
        %p142 = pneg %p141
      $region22: #{tpu_custom_call.1} parent=5 // pred_check_branch
        %144 = sbr.rel (%p142) target = $region24
      $region23: #{tpu_custom_call.1} parent=5 // pred_region
        // Predicated region
        $region25: #{tpu_custom_call.1} parent=23 // pred_check
          %p145 = pneg %p36
        $region26: #{tpu_custom_call.1} parent=23 // pred_check_branch
          %147 = sbr.rel (%p145) target = $region28
        $region27: #{tpu_custom_call.1} parent=23 // pred_region
          %s148 = sand.u32 %s26, 1
          %s149 = scalar_lea.sflag [#allocation3], %s148
          %s150 = sand.u32 %s26, 1
          %s151 = smul.addr %s150, 8
          %s152 = scalar_lea.vmem [#allocation2], %s151
          %s154 = ssub.s32 128, 128
          %155 = vsyncadd %s149, %s154
          %s156 = smul.addr %s16, 128
          %s157 = scalar_lea.hbm %s0, %s156
          %s159 = sshll.u32 %s152, 4
          %s160 = int_to_ptr.vmem [resolvable:$true] %s159
          %162 = dma.hbm_to_vmem [thread:$0]  %s157, 128, %s160, %s149
        $region28: #{tpu_custom_call.1} parent=23 // pred_fallthru
          _
      $region24: #{tpu_custom_call.1} parent=5 // pred_fallthru
        _
      %p163 = scmp.le.s32.totalorder 1, %s16
      %p164 = scmp.lt.s32.totalorder %s16, 3
      %p165 = pnand %p163, %p164
      %p166 = pneg %p165
      // Predicated region
      $region29: #{tpu_custom_call.1} parent=5 // pred_check
        _
      $region30: #{tpu_custom_call.1} parent=5 // pred_check_branch
        %168 = sbr.rel (%p165) target = $region32
      $region31: #{tpu_custom_call.1} parent=5 // pred_region
        %s169 = ssub.s32 %s16, 1
        %s170 = sand.u32 %s29, 1
        %s171 = scalar_lea.sflag [#allocation3], %s170
        %s172 = sand.u32 %s29, 1
        %s173 = smul.addr %s172, 8
        %s174 = scalar_lea.vmem [#allocation2], %s173
        // Predicated region
        $region33: #{tpu_custom_call.1} parent=31 // pred_check
          %p175 = pneg %p42
        $region34: #{tpu_custom_call.1} parent=31 // pred_check_branch
          %177 = sbr.rel (%p175) target = $region36
        $region35: #{tpu_custom_call.1} parent=31 // pred_region
          %178 = dma.done %s171, 128
        $region36: #{tpu_custom_call.1} parent=31 // pred_fallthru
          _
        // Predicated region
        $region37: #{tpu_custom_call.1} parent=31 // pred_check
          %p179 = pneg %p63
        $region38: #{tpu_custom_call.1} parent=31 // pred_check_branch
          %181 = sbr.rel (%p179) target = $region40
        $region39: #{tpu_custom_call.1} parent=31 // pred_region
          %182 = dma.done [#allocation6], 1536
        $region40: #{tpu_custom_call.1} parent=31 // pred_fallthru
          _
        %s183 = sand.u32 %s29, 1
        %s184 = scalar_lea.sflag [#allocation3], %s183
        %s185 = sand.u32 %s29, 1
        %s186 = smul.addr %s185, 8
        %s187 = scalar_lea.vmem [#allocation2], %s186
        %p188 = pneg %p42
        %p189 = pneg %p39
        %p190 = pneg %p63
        %p191 = pneg %p60
        %p192 = pneg %p84
        %p193 = pneg %p81
        %p194 = pneg %p110
        %p195 = pneg %p107
        %s196 = sand.u32 %s97, 1
        %s197 = scalar_lea.sflag [#allocation4], %s196
        %s198 = sand.u32 %s97, 1
        %s199 = smul.addr %s198, 8
        %s200 = scalar_lea.vmem [#allocation7], %s199
        %v201 = vld [vmem:[%s174] sm:$0xff]
        %v202 = vld [vmem:[#allocation5] sm:$0xff]
        %v203 = vld [vmem:[#allocation5 + $0x8] sm:$0xff]
        %v204 = vld [vmem:[#allocation5 + $0x10] sm:$0xff]
        %v205 = vld [vmem:[#allocation5 + $0x18] sm:$0xff]
        %v206 = vld [vmem:[#allocation5 + $0x20] sm:$0xff]
        %v207 = vld [vmem:[#allocation5 + $0x28] sm:$0xff]
        %v208 = vld [vmem:[#allocation5 + $0x30] sm:$0xff]
        %v209 = vld [vmem:[#allocation5 + $0x38] sm:$0xff]
        %v210 = vld [vmem:[#allocation5 + $0x40] sm:$0xff]
        %v211 = vld [vmem:[#allocation5 + $0x48] sm:$0xff]
        %v212 = vld [vmem:[#allocation5 + $0x50] sm:$0xff]
        %v213 = vld [vmem:[#allocation5 + $0x58] sm:$0xff]
        %v214 = vld [vmem:[%s2] sm:$0x7]
        %v216 = vlaneseq
        %v217 = vshrl.u32 %v216, 7
        %v218 = vsub.s32 0, %v217
        %v219 = vrot.slane %v214, %v218
        %v220 = vlaneseq
        %v221 = vshrl.u32 %v220, 7
        %v222 = vsub.s32 1, %v221
        %v223 = vrot.slane %v214, %v222
        %v224 = vlaneseq
        %v225 = vshrl.u32 %v224, 7
        %v226 = vsub.s32 2, %v225
        %v227 = vrot.slane %v214, %v226
        %vm231 = vcmask 261120
        %v233 = vsel %vm231, %v201, 0
        %235 = vmatprep.subr.mxu0 0.0
        %236 = vmatpush1.msra.mxu0 0.0
        %237 = vmatprep.subr.mxu0 0.0
        %238 = vmatpush1.msra.mxu0 0.0
        %239 = vmatprep.subr.mxu0 0.0
        %240 = vmatpush1.msra.mxu0 0.0
        %241 = vmatprep.subr.mxu0 0.0
        %242 = vmatpush1.msra.mxu0 0.0
        %243 = vmatprep.subr.mxu0 0.0
        %244 = vmatpush1.msra.mxu0 0.0
        %245 = vmatprep.subr.mxu0 0.0
        %246 = vmatpush1.msra.mxu0 0.0
        %247 = vmatprep.subr.mxu0 0.0
        %248 = vmatpush1.msra.mxu0 0.0
        %249 = vmatprep.subr.mxu0 0.0
        %250 = vmatpush1.msra.mxu0 0.0
        %251 = vmatprep.subr.mxu0 0.0
        %252 = vmatpush1.msra.mxu0 0.0
        %253 = vmatprep.subr.mxu0 0.0
        %254 = vmatpush1.msra.mxu0 0.0
        %255 = vmatprep.subr.mxu0 0.0
        %256 = vmatpush1.msra.mxu0 0.0
        %257 = vmatprep.subr.mxu0 0.0
        %258 = vmatpush1.msra.mxu0 0.0
        %259 = vmatprep.subr.mxu0 %v212
        %260 = vmatpush1.msra.mxu0 %v211
        %261 = vmatprep.subr.mxu0 %v209
        %262 = vmatpush1.msra.mxu0 %v208
        %263 = vmatprep.subr.mxu0 %v206
        %264 = vmatpush1.msra.mxu0 %v205
        %265 = vmatprep.subr.mxu0 %v203
        %266 = vmatpush1.msra.mxu0 %v202
        %267 = vmatprep.subr.mxu0 0.0
        %268 = vmatpush2.msra.mxu0 0.0
        %269 = vmatprep.subr.mxu0 0.0
        %270 = vmatpush2.msra.mxu0 0.0
        %271 = vmatprep.subr.mxu0 0.0
        %272 = vmatpush2.msra.mxu0 0.0
        %273 = vmatprep.subr.mxu0 0.0
        %274 = vmatpush2.msra.mxu0 0.0
        %275 = vmatprep.subr.mxu0 0.0
        %276 = vmatpush2.msra.mxu0 0.0
        %277 = vmatprep.subr.mxu0 0.0
        %278 = vmatpush2.msra.mxu0 0.0
        %279 = vmatprep.subr.mxu0 0.0
        %280 = vmatpush2.msra.mxu0 0.0
        %281 = vmatprep.subr.mxu0 0.0
        %282 = vmatpush2.msra.mxu0 0.0
        %283 = vmatprep.subr.mxu0 0.0
        %284 = vmatpush2.msra.mxu0 0.0
        %285 = vmatprep.subr.mxu0 0.0
        %286 = vmatpush2.msra.mxu0 0.0
        %287 = vmatprep.subr.mxu0 0.0
        %288 = vmatpush2.msra.mxu0 0.0
        %289 = vmatprep.subr.mxu0 0.0
        %290 = vmatpush2.msra.mxu0 0.0
        %291 = vmatprep.subr.mxu0 0.0
        %292 = vmatpush2.msra.mxu0 0.0
        %293 = vmatprep.subr.mxu0 0.0
        %294 = vmatpush2.msra.mxu0 0.0
        %295 = vmatprep.subr.mxu0 0.0
        %296 = vmatpush2.msra.mxu0 0.0
        %297 = vmatprep.subr.mxu0 0.0
        %298 = vmatpush2.msra.mxu0 0.0
        %299 = vmatprep.mubr.f32.mxu0 0.0
        %300 = vmatmul.mubr.f32.gmra.mxu0 %v233
        %v301 = vpop.f32.mrf.mxu0
        %v302 = vadd.f32 %v219, %v301
        %v303 = vpop.f32.mrf.mxu0
        %v304 = vadd.f32 %v223, %v303
        %305 = vdwg.mxu0
        %306 = vmatprep.subr.mxu0 0.0
        %307 = vmatpush1.msra.mxu0 0.0
        %308 = vmatprep.subr.mxu0 0.0
        %309 = vmatpush1.msra.mxu0 0.0
        %310 = vmatprep.subr.mxu0 0.0
        %311 = vmatpush1.msra.mxu0 0.0
        %312 = vmatprep.subr.mxu0 0.0
        %313 = vmatpush1.msra.mxu0 0.0
        %314 = vmatprep.subr.mxu0 0.0
        %315 = vmatpush1.msra.mxu0 0.0
        %316 = vmatprep.subr.mxu0 0.0
        %317 = vmatpush1.msra.mxu0 0.0
        %318 = vmatprep.subr.mxu0 0.0
        %319 = vmatpush1.msra.mxu0 0.0
        %320 = vmatprep.subr.mxu0 0.0
        %321 = vmatpush1.msra.mxu0 0.0
        %322 = vmatprep.subr.mxu0 0.0
        %323 = vmatpush1.msra.mxu0 0.0
        %324 = vmatprep.subr.mxu0 0.0
        %325 = vmatpush1.msra.mxu0 0.0
        %326 = vmatprep.subr.mxu0 0.0
        %327 = vmatpush1.msra.mxu0 0.0
        %328 = vmatprep.subr.mxu0 0.0
        %329 = vmatpush1.msra.mxu0 0.0
        %330 = vmatprep.subr.mxu0 0.0
        %331 = vmatpush1.msra.mxu0 %v213
        %332 = vmatprep.subr.mxu0 0.0
        %333 = vmatpush1.msra.mxu0 %v210
        %334 = vmatprep.subr.mxu0 0.0
        %335 = vmatpush1.msra.mxu0 %v207
        %336 = vmatprep.subr.mxu0 0.0
        %337 = vmatpush1.msra.mxu0 %v204
        %338 = vmatprep.subr.mxu0 0.0
        %339 = vmatpush2.msra.mxu0 0.0
        %340 = vmatprep.subr.mxu0 0.0
        %341 = vmatpush2.msra.mxu0 0.0
        %342 = vmatprep.subr.mxu0 0.0
        %343 = vmatpush2.msra.mxu0 0.0
        %344 = vmatprep.subr.mxu0 0.0
        %345 = vmatpush2.msra.mxu0 0.0
        %346 = vmatprep.subr.mxu0 0.0
        %347 = vmatpush2.msra.mxu0 0.0
        %348 = vmatprep.subr.mxu0 0.0
        %349 = vmatpush2.msra.mxu0 0.0
        %350 = vmatprep.subr.mxu0 0.0
        %351 = vmatpush2.msra.mxu0 0.0
        %352 = vmatprep.subr.mxu0 0.0
        %353 = vmatpush2.msra.mxu0 0.0
        %354 = vmatprep.subr.mxu0 0.0
        %355 = vmatpush2.msra.mxu0 0.0
        %356 = vmatprep.subr.mxu0 0.0
        %357 = vmatpush2.msra.mxu0 0.0
        %358 = vmatprep.subr.mxu0 0.0
        %359 = vmatpush2.msra.mxu0 0.0
        %360 = vmatprep.subr.mxu0 0.0
        %361 = vmatpush2.msra.mxu0 0.0
        %362 = vmatprep.subr.mxu0 0.0
        %363 = vmatpush2.msra.mxu0 0.0
        %364 = vmatprep.subr.mxu0 0.0
        %365 = vmatpush2.msra.mxu0 0.0
        %366 = vmatprep.subr.mxu0 0.0
        %367 = vmatpush2.msra.mxu0 0.0
        %368 = vmatprep.subr.mxu0 0.0
        %369 = vmatpush2.msra.mxu0 0.0
        %370 = vmatprep.mubr.f32.mxu0 0.0
        %371 = vmatmul.mubr.f32.gmra.mxu0 %v233
        %v372 = vpop.f32.mrf.mxu0
        %v373 = vadd.f32 %v227, %v372
        %v374 = vpop.f32.mrf.mxu0
        %375 = vdwg.mxu0
        %376 = vmatprep.subr.mxu0 0.0
        %377 = vmatpush1.xpose.msra.mxu0 0.0
        %378 = vmatprep.subr.mxu0 0.0
        %379 = vmatpush1.xpose.msra.mxu0 0.0
        %380 = vmatprep.subr.mxu0 0.0
        %381 = vmatpush1.xpose.msra.mxu0 0.0
        %382 = vmatprep.subr.mxu0 0.0
        %383 = vmatpush1.xpose.msra.mxu0 0.0
        %384 = vmatprep.subr.mxu0 0.0
        %385 = vmatpush1.xpose.msra.mxu0 0.0
        %386 = vmatprep.subr.mxu0 0.0
        %387 = vmatpush1.xpose.msra.mxu0 0.0
        %388 = vmatprep.subr.mxu0 0.0
        %389 = vmatpush1.xpose.msra.mxu0 0.0
        %390 = vmatprep.subr.mxu0 0.0
        %391 = vmatpush1.xpose.msra.mxu0 0.0
        %392 = vmatprep.subr.mxu0 0.0
        %393 = vmatpush1.xpose.msra.mxu0 0.0
        %394 = vmatprep.subr.mxu0 0.0
        %395 = vmatpush1.xpose.msra.mxu0 0.0
        %396 = vmatprep.subr.mxu0 0.0
        %397 = vmatpush1.xpose.msra.mxu0 0.0
        %398 = vmatprep.subr.mxu0 0.0
        %399 = vmatpush1.xpose.msra.mxu0 0.0
        %400 = vmatprep.subr.mxu0 0.0
        %401 = vmatpush1.xpose.msra.mxu0 0.0
        %402 = vmatprep.subr.mxu0 0.0
        %403 = vmatpush1.xpose.msra.mxu0 0.0
        %404 = vmatprep.subr.mxu0 0.0
        %405 = vmatpush1.xpose.msra.mxu0 0.0
        %406 = vmatprep.subr.mxu0 0.0
        %407 = vmatpush1.xpose.msra.mxu0 %v304
        %408 = vmatprep.subr.mxu0 0.0
        %409 = vmatpush2.xpose.msra.mxu0 0.0
        %410 = vmatprep.subr.mxu0 0.0
        %411 = vmatpush2.xpose.msra.mxu0 0.0
        %412 = vmatprep.subr.mxu0 0.0
        %413 = vmatpush2.xpose.msra.mxu0 0.0
        %414 = vmatprep.subr.mxu0 0.0
        %415 = vmatpush2.xpose.msra.mxu0 0.0
        %416 = vmatprep.subr.mxu0 0.0
        %417 = vmatpush2.xpose.msra.mxu0 0.0
        %418 = vmatprep.subr.mxu0 0.0
        %419 = vmatpush2.xpose.msra.mxu0 0.0
        %420 = vmatprep.subr.mxu0 0.0
        %421 = vmatpush2.xpose.msra.mxu0 0.0
        %422 = vmatprep.subr.mxu0 0.0
        %423 = vmatpush2.xpose.msra.mxu0 0.0
        %424 = vmatprep.subr.mxu0 0.0
        %425 = vmatpush2.xpose.msra.mxu0 0.0
        %426 = vmatprep.subr.mxu0 0.0
        %427 = vmatpush2.xpose.msra.mxu0 0.0
        %428 = vmatprep.subr.mxu0 0.0
        %429 = vmatpush2.xpose.msra.mxu0 0.0
        %430 = vmatprep.subr.mxu0 0.0
        %431 = vmatpush2.xpose.msra.mxu0 0.0
        %432 = vmatprep.subr.mxu0 0.0
        %433 = vmatpush2.xpose.msra.mxu0 0.0
        %434 = vmatprep.subr.mxu0 0.0
        %435 = vmatpush2.xpose.msra.mxu0 0.0
        %436 = vmatprep.subr.mxu0 0.0
        %437 = vmatpush2.xpose.msra.mxu0 0.0
        %438 = vmatprep.subr.mxu0 0.0
        %439 = vmatpush2.xpose.msra.mxu0 0.0
        %440 = vmatprep.mubr.f32.mxu0 0.0
        %441 = vmatmul.mubr.f32.gmra.mxu0 %v302
        %v442 = vpop.f32.mrf.mxu0
        %v443 = vadd.f32 0.0, %v442
        %v444 = vpop.f32.mrf.mxu0
        %445 = vdwg.mxu0
        %vm446 = vcmask 64512
        %v447 = vsel %vm446, %v443, -inf
        %448 = vmax.xlane.f32.xlu0 %v447
        %v449 = vpop.xlane.xlu0 %448
        %v450 = vsub.f32 %v443, %v449
        %v451 = vmul.f32 %v450, 1.442695
        %v452 = vpow.pop %v451
        %v453 = vsel %vm446, %v452, 0.0
        %454 = vadd.xlane.f32.xlu0 %v453
        %v455 = vpop.xlane.xlu0 %454
        %v456 = vrcp.pop %v455
        %v457 = vmul.f32 %v452, %v456
        %v459 = vsel %vm446, %v457, 0
        %461 = vmatprep.subr.mxu0 0.0
        %462 = vmatpush1.msra.mxu0 0.0
        %463 = vmatprep.subr.mxu0 0.0
        %464 = vmatpush1.msra.mxu0 0.0
        %465 = vmatprep.subr.mxu0 0.0
        %466 = vmatpush1.msra.mxu0 0.0
        %467 = vmatprep.subr.mxu0 0.0
        %468 = vmatpush1.msra.mxu0 0.0
        %469 = vmatprep.subr.mxu0 0.0
        %470 = vmatpush1.msra.mxu0 0.0
        %471 = vmatprep.subr.mxu0 0.0
        %472 = vmatpush1.msra.mxu0 0.0
        %473 = vmatprep.subr.mxu0 0.0
        %474 = vmatpush1.msra.mxu0 0.0
        %475 = vmatprep.subr.mxu0 0.0
        %476 = vmatpush1.msra.mxu0 0.0
        %477 = vmatprep.subr.mxu0 0.0
        %478 = vmatpush1.msra.mxu0 0.0
        %479 = vmatprep.subr.mxu0 0.0
        %480 = vmatpush1.msra.mxu0 0.0
        %481 = vmatprep.subr.mxu0 0.0
        %482 = vmatpush1.msra.mxu0 0.0
        %483 = vmatprep.subr.mxu0 0.0
        %484 = vmatpush1.msra.mxu0 0.0
        %485 = vmatprep.subr.mxu0 0.0
        %486 = vmatpush1.msra.mxu0 0.0
        %487 = vmatprep.subr.mxu0 0.0
        %488 = vmatpush1.msra.mxu0 0.0
        %489 = vmatprep.subr.mxu0 0.0
        %490 = vmatpush1.msra.mxu0 0.0
        %491 = vmatprep.subr.mxu0 0.0
        %492 = vmatpush1.msra.mxu0 %v373
        %493 = vmatprep.subr.mxu0 0.0
        %494 = vmatpush2.msra.mxu0 0.0
        %495 = vmatprep.subr.mxu0 0.0
        %496 = vmatpush2.msra.mxu0 0.0
        %497 = vmatprep.subr.mxu0 0.0
        %498 = vmatpush2.msra.mxu0 0.0
        %499 = vmatprep.subr.mxu0 0.0
        %500 = vmatpush2.msra.mxu0 0.0
        %501 = vmatprep.subr.mxu0 0.0
        %502 = vmatpush2.msra.mxu0 0.0
        %503 = vmatprep.subr.mxu0 0.0
        %504 = vmatpush2.msra.mxu0 0.0
        %505 = vmatprep.subr.mxu0 0.0
        %506 = vmatpush2.msra.mxu0 0.0
        %507 = vmatprep.subr.mxu0 0.0
        %508 = vmatpush2.msra.mxu0 0.0
        %509 = vmatprep.subr.mxu0 0.0
        %510 = vmatpush2.msra.mxu0 0.0
        %511 = vmatprep.subr.mxu0 0.0
        %512 = vmatpush2.msra.mxu0 0.0
        %513 = vmatprep.subr.mxu0 0.0
        %514 = vmatpush2.msra.mxu0 0.0
        %515 = vmatprep.subr.mxu0 0.0
        %516 = vmatpush2.msra.mxu0 0.0
        %517 = vmatprep.subr.mxu0 0.0
        %518 = vmatpush2.msra.mxu0 0.0
        %519 = vmatprep.subr.mxu0 0.0
        %520 = vmatpush2.msra.mxu0 0.0
        %521 = vmatprep.subr.mxu0 0.0
        %522 = vmatpush2.msra.mxu0 0.0
        %523 = vmatprep.subr.mxu0 0.0
        %524 = vmatpush2.msra.mxu0 0.0
        %525 = vmatprep.mubr.f32.mxu0 0.0
        %526 = vmatmul.mubr.f32.gmra.mxu0 %v459
        %v527 = vpop.f32.mrf.mxu0
        %v528 = vadd.f32 0.0, %v527
        %v529 = vpop.f32.mrf.mxu0
        %530 = vdwg.mxu0
        %531 = vst [vmem:[%s200] sm:$0xff] %v528
        %s532 = sand.u32 %s97, 1
        %s533 = scalar_lea.sflag [#allocation4], %s532
        %s534 = sand.u32 %s97, 1
        %s535 = smul.addr %s534, 8
        %s536 = scalar_lea.vmem [#allocation7], %s535
        // Predicated region
        $region41: #{tpu_custom_call.1} parent=31 // pred_check
          %p537 = pneg %p107
        $region42: #{tpu_custom_call.1} parent=31 // pred_check_branch
          %539 = sbr.rel (%p537) target = $region44
        $region43: #{tpu_custom_call.1} parent=31 // pred_region
          %s541 = ssub.s32 128, 128
          %542 = vsyncadd %s533, %s541
          %s543 = smul.addr %s21, 128
          %s544 = scalar_lea.hbm %s3, %s543
          %s546 = sshll.u32 %s536, 4
          %s547 = int_to_ptr.vmem [resolvable:$true] %s546
          %549 = dma.vmem_to_hbm [thread:$0]  %s547, 128, %s544, %s533
        $region44: #{tpu_custom_call.1} parent=31 // pred_fallthru
          _
      $region32: #{tpu_custom_call.1} parent=5 // pred_fallthru
        _
      %p550 = scmp.le.s32.totalorder 2, %s16
      // Predicated region
      $region45: #{tpu_custom_call.1} parent=5 // pred_check
        %p551 = pneg %p550
      $region46: #{tpu_custom_call.1} parent=5 // pred_check_branch
        %553 = sbr.rel (%p551) target = $region48
      $region47: #{tpu_custom_call.1} parent=5 // pred_region
        %s554 = ssub.s32 %s16, 2
        // Predicated region
        $region49: #{tpu_custom_call.1} parent=47 // pred_check
          %p555 = pneg %p113
        $region50: #{tpu_custom_call.1} parent=47 // pred_check_branch
          %557 = sbr.rel (%p555) target = $region52
        $region51: #{tpu_custom_call.1} parent=47 // pred_region
          %s558 = sand.u32 %s98, 1
          %s559 = scalar_lea.sflag [#allocation4], %s558
          %s560 = sand.u32 %s98, 1
          %s561 = smul.addr %s560, 8
          %s562 = scalar_lea.vmem [#allocation7], %s561
          %563 = dma.done %s559, 128
        $region52: #{tpu_custom_call.1} parent=47 // pred_fallthru
          _
      $region48: #{tpu_custom_call.1} parent=5 // pred_fallthru
        _
    $region6: #{tpu_custom_call.1} parent=1 // loop_footer
      %s20 = sadd.s32 1, %s16
    $region7: #{tpu_custom_call.1} parent=1 // loop_footer_branch
      %15 = sbr.rel target = $region3
    $region8: #{tpu_custom_call.1} parent=1 // loop_exit
      _
    %564 = vsyncpa [#allocation3], 1
    %s565 = scalar_lea.sflag [#allocation3], 1
    %566 = vsyncpa %s565, 1
    %567 = vsyncpa [#allocation6], 1
    %568 = vsyncpa [#allocation4], 1
    %s569 = scalar_lea.sflag [#allocation4], 1
    %570 = vsyncpa %s569, 1

</llo_original>
